<compile_context>
chip_gen: v5e
topology: v5e:2x2
jax: 0.10.0
libtpu: 0.0.40
codegen_flags: <defaults>
</compile_context>

<pallas_src>
import functools

import jax
import jax.numpy as jnp
from jax.experimental import pallas as pl
from jax.experimental.pallas import tpu as pltpu

LANES = 128
NEG_BIG = -1e30  # bias for padded output channels so log_softmax ignores them


def _round_up(v, m):
    return (v + m - 1) // m * m


def _pad2d(x, rows, cols, fill=0.0, dtype=None):
    dtype = x.dtype if dtype is None else dtype
    out = jnp.full((rows, cols), fill, dtype)
    return out.at[: x.shape[0], : x.shape[1]].set(x.astype(dtype))


# ----------------------------- kernel ---------------------------------------


def _sage_fused_kernel(a_ref, x_ref, wh_ref, sc_ref, sh_ref,
                       wf_ref, bf_ref, out_ref, cat_ref, *, num_hidden, c_pad):
    """All SAGE layers fused; activations stay in VMEM between layers.

    a_ref   : (Np, Np)          bf16  row-normalized adjacency (mean aggregation)
    x_ref   : (Np, Cp)          bf16  node features (channel-padded)
    wh_ref  : (L-1, 2*Cp, Cp)   bf16  per-hidden-layer stacked [W_l; W_r]
    sc_ref  : (L-1, 1, Cp)      f32   folded BN scale
    sh_ref  : (L-1, 1, Cp)      f32   folded BN shift (conv bias already folded in)
    wf_ref  : (2*Cp, Cp)        bf16  final stacked [W_l; W_r]
    bf_ref  : (1, Cp)           f32   final bias (-1e30 in padded lanes)
    out_ref : (Np, Cp)          f32   log_softmax output
    cat_ref : (Np, 2*Cp)        bf16  VMEM scratch holding [agg | h]
    """
    a = a_ref[...]
    h = x_ref[...]

    for l in range(num_hidden):
        # mean aggregation over neighbours: (Np, Np) @ (Np, Cp), f32 accumulation
        agg = jnp.dot(a, h, preferred_element_type=jnp.float32)
        # single deep matmul instead of two shallow ones: [agg | h] @ [W_l; W_r]
        cat_ref[:, :c_pad] = agg.astype(jnp.bfloat16)
        cat_ref[:, c_pad:] = h
        z = jnp.dot(cat_ref[...], wh_ref[l], preferred_element_type=jnp.float32)
        # BatchNorm1d (eval) + conv bias folded to a single per-channel affine, then ReLU.
        # Dropout is identity in eval mode.
        z = z * sc_ref[l] + sh_ref[l]
        h = jnp.maximum(z, 0.0).astype(jnp.bfloat16)

    # final SAGEConv + log_softmax over channels
    agg = jnp.dot(a, h, preferred_element_type=jnp.float32)
    cat_ref[:, :c_pad] = agg.astype(jnp.bfloat16)
    cat_ref[:, c_pad:] = h
    z = jnp.dot(cat_ref[...], wf_ref[...],
                preferred_element_type=jnp.float32) + bf_ref[...]
    m = jnp.max(z, axis=-1, keepdims=True)           # padded lanes hold -1e30
    s = z - m
    lse = jnp.log(jnp.sum(jnp.exp(s), axis=-1, keepdims=True))
    out_ref[...] = s - lse


# ----------------------------- wrapper ---------------------------------------


@functools.partial(jax.jit, static_argnames=("out_channels",))
def sage_forward(x, a_norm, packed, out_channels):
    """Full SAGE forward pass (eval mode) in one fused Pallas kernel."""
    n, _ = x.shape
    n_pad = _round_up(max(n, 8), 8)

    wh, sc, sh = packed["wh"], packed["sc"], packed["sh"]
    wf, bf = packed["wf"], packed["bf"]
    num_hidden = wh.shape[0]
    c_pad = wf.shape[1]

    a_p = _pad2d(a_norm, n_pad, n_pad, dtype=jnp.bfloat16)
    x_p = _pad2d(x, n_pad, c_pad, dtype=jnp.bfloat16)

    kernel = functools.partial(_sage_fused_kernel,
                               num_hidden=num_hidden, c_pad=c_pad)

    def full(shape):
        nd = len(shape)
        return pl.BlockSpec(shape, lambda i, _nd=nd: (0,) * _nd)

    out = pl.pallas_call(
        kernel,
        out_shape=jax.ShapeDtypeStruct((n_pad, c_pad), jnp.float32),
        grid=(1,),
        in_specs=[
            full((n_pad, n_pad)),                    # A_mean
            full((n_pad, c_pad)),                    # x (passed once)
            full((num_hidden, 2 * c_pad, c_pad)),    # stacked hidden weights
            full((num_hidden, 1, c_pad)),            # BN scale
            full((num_hidden, 1, c_pad)),            # BN shift (+ conv bias)
            full((2 * c_pad, c_pad)),                # stacked final weight
            full((1, c_pad)),                        # final bias
        ],
        out_specs=full((n_pad, c_pad)),
        scratch_shapes=[pltpu.VMEM((n_pad, 2 * c_pad), jnp.bfloat16)],
        compiler_params=pltpu.CompilerParams(
            dimension_semantics=("arbitrary",)),
    )(a_p, x_p, wh, sc, sh, wf, bf)

    return out[:n, :out_channels]


def pack_params(params, c_pad=LANES):
    """Host-side packing: pad channels to `c_pad` lanes, stack [W_l; W_r], cast bf16.

    The hidden conv bias is folded into the BN shift: z*scale + (b*scale + shift).
    """
    assert c_pad % LANES == 0
    wh, sc, sh = [], [], []
    for (wl, wr, bl, scale, shift) in params["hidden"]:
        fin, fout = wl.shape
        assert fin <= c_pad and fout <= c_pad
        w = jnp.concatenate([_pad2d(wl, c_pad, c_pad),
                             _pad2d(wr, c_pad, c_pad)], axis=0)
        wh.append(w.astype(jnp.bfloat16))
        # pad scale with 1 and shift with 0: padded channels stay exactly zero
        sc.append(jnp.ones((1, c_pad), jnp.float32).at[:, :fout].set(scale))
        shift_fused = bl * scale + shift
        sh.append(_pad2d(shift_fused, 1, c_pad))

    wl, wr, bl = params["final"]
    fin, fout = wl.shape
    assert fin <= c_pad and fout <= c_pad
    wf = jnp.concatenate([_pad2d(wl, c_pad, c_pad),
                          _pad2d(wr, c_pad, c_pad)], axis=0).astype(jnp.bfloat16)
    # -1e30 bias in padded lanes keeps the in-kernel log_softmax exact
    bf = jnp.full((1, c_pad), NEG_BIG, jnp.float32).at[:, :fout].set(bl)

    return {"wh": jnp.stack(wh), "sc": jnp.stack(sc), "sh": jnp.stack(sh),
            "wf": wf, "bf": bf}


# ----------------------------- references ------------------------------------


def sage_forward_ref(x, a_norm, params):
    """Pure-f32 JAX reference (exact eval-mode PyTorch semantics)."""
    h = x
    for (wl, wr, bl, scale, shift) in params["hidden"]:
        h = (a_norm @ h) @ wl + h @ wr + bl
        h = h * scale + shift
        h = jnp.maximum(h, 0.0)
    wl, wr, bl = params["final"]
    h = (a_norm @ h) @ wl + h @ wr + bl
    return jax.nn.log_softmax(h, axis=-1)


def sage_forward_ref_mixed(x, a_norm, params):
    """JAX reference replicating the kernel's bf16-input / f32-accumulate arithmetic."""
    bf = jnp.bfloat16
    a = a_norm.astype(bf)
    h = x.astype(bf)

    def layer(h, wl, wr):
        agg = jnp.dot(a, h, preferred_element_type=jnp.float32).astype(bf)
        cat = jnp.concatenate([agg, h], axis=-1)
        w = jnp.concatenate([wl, wr], axis=0).astype(bf)
        return jnp.dot(cat, w, preferred_element_type=jnp.float32)

    for (wl, wr, bl, scale, shift) in params["hidden"]:
        z = layer(h, wl, wr)
        z = z * scale + (bl * scale + shift)     # same op order as the kernel
        h = jnp.maximum(z, 0.0).astype(bf)
    wl, wr, bl = params["final"]
    z = layer(h, wl, wr) + bl
    return jax.nn.log_softmax(z, axis=-1)


# ----------------------------- setup -----------------------------------------


def init_params(key, in_channels, hidden_channels, out_channels, num_layers):
    """Deterministic synthetic parameter init matching SAGE.__init__ shapes."""
    dims = [in_channels] + [hidden_channels] * (num_layers - 1) + [out_channels]
    hidden = []
    keys = jax.random.split(key, num_layers * 3)
    for li in range(num_layers - 1):
        fin, fout = dims[li], dims[li + 1]
        k0, k1, k2 = keys[3 * li], keys[3 * li + 1], keys[3 * li + 2]
        s = (2.0 / (fin + fout)) ** 0.5
        wl = jax.random.normal(k0, (fin, fout), jnp.float32) * s
        wr = jax.random.normal(k1, (fin, fout), jnp.float32) * s
        bl = jax.random.normal(k2, (1, fout), jnp.float32) * 0.01
        # BatchNorm1d (eval, running_mean=0, running_var=1): fold to affine
        gamma = 1.0 + 0.1 * jax.random.normal(jax.random.fold_in(k0, 7),
                                              (1, fout), jnp.float32)
        beta = 0.05 * jax.random.normal(jax.random.fold_in(k1, 7),
                                        (1, fout), jnp.float32)
        eps = 1e-5
        scale = gamma / jnp.sqrt(1.0 + eps)
        shift = beta  # running_mean = 0
        hidden.append((wl, wr, bl, scale, shift))
    fin, fout = dims[-2], dims[-1]
    k0, k1, k2 = keys[-3], keys[-2], keys[-1]
    s = (2.0 / (fin + fout)) ** 0.5
    final = (jax.random.normal(k0, (fin, fout), jnp.float32) * s,
             jax.random.normal(k1, (fin, fout), jnp.float32) * s,
             jax.random.normal(k2, (1, fout), jnp.float32) * 0.01)
    return {"hidden": hidden, "final": final}


def make_graph(key, n):
    """Dense random graph -> row-normalized mean-aggregation matrix."""
    ka, _ = jax.random.split(key)
    adj = (jax.random.uniform(ka, (n, n)) < 0.1).astype(jnp.float32)
    adj = jnp.maximum(adj, adj.T)                      # symmetric
    adj = adj * (1.0 - jnp.eye(n, dtype=jnp.float32))  # no self loops
    deg = jnp.clip(adj.sum(axis=1, keepdims=True), 1.0, None)
    return adj / deg


if __name__ == "__main__":
    key = jax.random.PRNGKey(0)
    k_x, k_g, k_p = jax.random.split(key, 3)

    N = 64                              # number of graph nodes
    IN_C, HID_C, OUT_C = 16, 32, 8
    NUM_LAYERS, DROPOUT = 3, 0.5        # dropout unused (eval mode)

    x = jax.random.normal(k_x, (N, IN_C), jnp.float32)
    a_norm = make_graph(k_g, N)
    params = init_params(k_p, IN_C, HID_C, OUT_C, NUM_LAYERS)
    packed = pack_params(params)

    out = sage_forward(x, a_norm, packed, out_channels=OUT_C)
    out = jax.block_until_ready(out)
    assert out.shape == (N, OUT_C)

    # exact-semantics check (same bf16/f32 mixed-precision arithmetic as the kernel)
    ref_mixed = sage_forward_ref_mixed(x, a_norm, params)
    assert jnp.allclose(out, ref_mixed, rtol=5e-3, atol=5e-3), \
        "mismatch vs bf16-matched JAX reference"

    # sanity check vs full-f32 reference (tolerance covers the bf16 MXU-input budget)
    ref_f32 = sage_forward_ref(x, a_norm, params)
    assert jnp.allclose(out, ref_f32, rtol=5e-2, atol=2e-1), \
        "mismatch vs f32 JAX reference (beyond bf16 precision budget)"

    print("KERNEL_OK")
</pallas_src>

<mosaic_0001>
module attributes {stable_mosaic.version = 11 : i64} {
  func.func @_sage_fused_kernel(%arg0: i32, %arg1: memref<64x64xbf16, #tpu.memory_space<vmem>>, %arg2: memref<64x128xbf16, #tpu.memory_space<vmem>>, %arg3: memref<2x256x128xbf16, #tpu.memory_space<vmem>>, %arg4: memref<2x1x128xf32, #tpu.memory_space<vmem>>, %arg5: memref<2x1x128xf32, #tpu.memory_space<vmem>>, %arg6: memref<256x128xbf16, #tpu.memory_space<vmem>>, %arg7: memref<1x128xf32, #tpu.memory_space<vmem>>, %arg8: memref<64x128xf32, #tpu.memory_space<vmem>>, %arg9: memref<64x256xbf16, #tpu.memory_space<vmem>>) attributes {dimension_semantics = [#tpu.dimension_semantics<arbitrary>], iteration_bounds = array<i64: 1>, scalar_prefetch = 0 : i64, scratch_operands = 1 : i64, tpu.core_type = #tpu.core_type<tc>, window_params = [{pipeline_mode = #tpu.pipeline_mode<synchronous>, transform_indices = @transform_0, window_bounds = array<i64: 64, 64>}, {pipeline_mode = #tpu.pipeline_mode<synchronous>, transform_indices = @transform_1, window_bounds = array<i64: 64, 128>}, {pipeline_mode = #tpu.pipeline_mode<synchronous>, transform_indices = @transform_2, window_bounds = array<i64: 2, 256, 128>}, {pipeline_mode = #tpu.pipeline_mode<synchronous>, transform_indices = @transform_3, window_bounds = array<i64: 2, 1, 128>}, {pipeline_mode = #tpu.pipeline_mode<synchronous>, transform_indices = @transform_4, window_bounds = array<i64: 2, 1, 128>}, {pipeline_mode = #tpu.pipeline_mode<synchronous>, transform_indices = @transform_5, window_bounds = array<i64: 256, 128>}, {pipeline_mode = #tpu.pipeline_mode<synchronous>, transform_indices = @transform_6, window_bounds = array<i64: 1, 128>}, {pipeline_mode = #tpu.pipeline_mode<synchronous>, transform_indices = @transform_7, window_bounds = array<i64: 64, 128>}]} {
    %c0 = arith.constant 0 : index
    %c0_0 = arith.constant 0 : index
    %0 = vector.load %arg1[%c0, %c0_0] : memref<64x64xbf16, #tpu.memory_space<vmem>>, vector<64x64xbf16>
    %c0_1 = arith.constant 0 : index
    %c0_2 = arith.constant 0 : index
    %1 = vector.load %arg2[%c0_1, %c0_2] : memref<64x128xbf16, #tpu.memory_space<vmem>>, vector<64x128xbf16>
    %cst = arith.constant dense<0.000000e+00> : vector<64x128xf32>
    %2 = tpu.matmul %0, %1, %cst {dimension_numbers = #tpu.dot_dimension_numbers<[1], [0], [0], [1], [0, 0, 1, 1], [], []>} : vector<64x64xbf16>, vector<64x128xbf16>, vector<64x128xf32> -> vector<64x128xf32>
    %3 = arith.truncf %2 : vector<64x128xf32> to vector<64x128xbf16>
    %c0_3 = arith.constant 0 : index
    %c0_4 = arith.constant 0 : index
    %4 = vector.load %arg9[%c0_3, %c0_4] : memref<64x256xbf16, #tpu.memory_space<vmem>>, vector<64x128xbf16>
    tpu.vector_store %arg9[%c0_3, %c0_4], %3 {strides = array<i32>} : memref<64x256xbf16, #tpu.memory_space<vmem>>, vector<64x128xbf16>,
    %c0_5 = arith.constant 0 : index
    %c128 = arith.constant 128 : index
    %5 = vector.load %arg9[%c0_5, %c128] : memref<64x256xbf16, #tpu.memory_space<vmem>>, vector<64x128xbf16>
    tpu.vector_store %arg9[%c0_5, %c128], %1 {strides = array<i32>} : memref<64x256xbf16, #tpu.memory_space<vmem>>, vector<64x128xbf16>,
    %c0_6 = arith.constant 0 : index
    %c0_7 = arith.constant 0 : index
    %6 = vector.load %arg9[%c0_6, %c0_7] : memref<64x256xbf16, #tpu.memory_space<vmem>>, vector<64x256xbf16>
    %c0_8 = arith.constant 0 : index
    %c0_9 = arith.constant 0 : index
    %c0_10 = arith.constant 0 : index
    %7 = vector.load %arg3[%c0_8, %c0_9, %c0_10] : memref<2x256x128xbf16, #tpu.memory_space<vmem>>, vector<1x256x128xbf16>
    %8 = vector.shape_cast %7 : vector<1x256x128xbf16> to vector<256x128xbf16>
    %cst_11 = arith.constant dense<0.000000e+00> : vector<64x128xf32>
    %9 = tpu.matmul %6, %8, %cst_11 {dimension_numbers = #tpu.dot_dimension_numbers<[1], [0], [0], [1], [0, 0, 1, 1], [], []>} : vector<64x256xbf16>, vector<256x128xbf16>, vector<64x128xf32> -> vector<64x128xf32>
    %c0_12 = arith.constant 0 : index
    %c0_13 = arith.constant 0 : index
    %c0_14 = arith.constant 0 : index
    %10 = vector.load %arg4[%c0_12, %c0_13, %c0_14] : memref<2x1x128xf32, #tpu.memory_space<vmem>>, vector<1x1x128xf32>
    %11 = vector.shape_cast %10 : vector<1x1x128xf32> to vector<1x128xf32>
    %12 = vector.broadcast %11 : vector<1x128xf32> to vector<64x128xf32>
    %13 = arith.mulf %9, %12 : vector<64x128xf32>
    %c0_15 = arith.constant 0 : index
    %c0_16 = arith.constant 0 : index
    %c0_17 = arith.constant 0 : index
    %14 = vector.load %arg5[%c0_15, %c0_16, %c0_17] : memref<2x1x128xf32, #tpu.memory_space<vmem>>, vector<1x1x128xf32>
    %15 = vector.shape_cast %14 : vector<1x1x128xf32> to vector<1x128xf32>
    %16 = vector.broadcast %15 : vector<1x128xf32> to vector<64x128xf32>
    %17 = arith.addf %13, %16 : vector<64x128xf32>
    %cst_18 = arith.constant 0.000000e+00 : f32
    %18 = vector.broadcast %cst_18 : f32 to vector<64x128xf32>
    %19 = arith.maximumf %17, %18 : vector<64x128xf32>
    %20 = arith.truncf %19 : vector<64x128xf32> to vector<64x128xbf16>
    %cst_19 = arith.constant dense<0.000000e+00> : vector<64x128xf32>
    %21 = tpu.matmul %0, %20, %cst_19 {dimension_numbers = #tpu.dot_dimension_numbers<[1], [0], [0], [1], [0, 0, 1, 1], [], []>} : vector<64x64xbf16>, vector<64x128xbf16>, vector<64x128xf32> -> vector<64x128xf32>
    %22 = arith.truncf %21 : vector<64x128xf32> to vector<64x128xbf16>
    %c0_20 = arith.constant 0 : index
    %c0_21 = arith.constant 0 : index
    %23 = vector.load %arg9[%c0_20, %c0_21] : memref<64x256xbf16, #tpu.memory_space<vmem>>, vector<64x128xbf16>
    tpu.vector_store %arg9[%c0_20, %c0_21], %22 {strides = array<i32>} : memref<64x256xbf16, #tpu.memory_space<vmem>>, vector<64x128xbf16>,
    %c0_22 = arith.constant 0 : index
    %c128_23 = arith.constant 128 : index
    %24 = vector.load %arg9[%c0_22, %c128_23] : memref<64x256xbf16, #tpu.memory_space<vmem>>, vector<64x128xbf16>
    tpu.vector_store %arg9[%c0_22, %c128_23], %20 {strides = array<i32>} : memref<64x256xbf16, #tpu.memory_space<vmem>>, vector<64x128xbf16>,
    %c0_24 = arith.constant 0 : index
    %c0_25 = arith.constant 0 : index
    %25 = vector.load %arg9[%c0_24, %c0_25] : memref<64x256xbf16, #tpu.memory_space<vmem>>, vector<64x256xbf16>
    %c1 = arith.constant 1 : index
    %c0_26 = arith.constant 0 : index
    %c0_27 = arith.constant 0 : index
    %26 = vector.load %arg3[%c1, %c0_26, %c0_27] : memref<2x256x128xbf16, #tpu.memory_space<vmem>>, vector<1x256x128xbf16>
    %27 = vector.shape_cast %26 : vector<1x256x128xbf16> to vector<256x128xbf16>
    %cst_28 = arith.constant dense<0.000000e+00> : vector<64x128xf32>
    %28 = tpu.matmul %25, %27, %cst_28 {dimension_numbers = #tpu.dot_dimension_numbers<[1], [0], [0], [1], [0, 0, 1, 1], [], []>} : vector<64x256xbf16>, vector<256x128xbf16>, vector<64x128xf32> -> vector<64x128xf32>
    %c1_29 = arith.constant 1 : index
    %c0_30 = arith.constant 0 : index
    %c0_31 = arith.constant 0 : index
    %29 = vector.load %arg4[%c1_29, %c0_30, %c0_31] : memref<2x1x128xf32, #tpu.memory_space<vmem>>, vector<1x1x128xf32>
    %30 = vector.shape_cast %29 : vector<1x1x128xf32> to vector<1x128xf32>
    %31 = vector.broadcast %30 : vector<1x128xf32> to vector<64x128xf32>
    %32 = arith.mulf %28, %31 : vector<64x128xf32>
    %c1_32 = arith.constant 1 : index
    %c0_33 = arith.constant 0 : index
    %c0_34 = arith.constant 0 : index
    %33 = vector.load %arg5[%c1_32, %c0_33, %c0_34] : memref<2x1x128xf32, #tpu.memory_space<vmem>>, vector<1x1x128xf32>
    %34 = vector.shape_cast %33 : vector<1x1x128xf32> to vector<1x128xf32>
    %35 = vector.broadcast %34 : vector<1x128xf32> to vector<64x128xf32>
    %36 = arith.addf %32, %35 : vector<64x128xf32>
    %cst_35 = arith.constant 0.000000e+00 : f32
    %37 = vector.broadcast %cst_35 : f32 to vector<64x128xf32>
    %38 = arith.maximumf %36, %37 : vector<64x128xf32>
    %39 = arith.truncf %38 : vector<64x128xf32> to vector<64x128xbf16>
    %cst_36 = arith.constant dense<0.000000e+00> : vector<64x128xf32>
    %40 = tpu.matmul %0, %39, %cst_36 {dimension_numbers = #tpu.dot_dimension_numbers<[1], [0], [0], [1], [0, 0, 1, 1], [], []>} : vector<64x64xbf16>, vector<64x128xbf16>, vector<64x128xf32> -> vector<64x128xf32>
    %41 = arith.truncf %40 : vector<64x128xf32> to vector<64x128xbf16>
    %c0_37 = arith.constant 0 : index
    %c0_38 = arith.constant 0 : index
    %42 = vector.load %arg9[%c0_37, %c0_38] : memref<64x256xbf16, #tpu.memory_space<vmem>>, vector<64x128xbf16>
    tpu.vector_store %arg9[%c0_37, %c0_38], %41 {strides = array<i32>} : memref<64x256xbf16, #tpu.memory_space<vmem>>, vector<64x128xbf16>,
    %c0_39 = arith.constant 0 : index
    %c128_40 = arith.constant 128 : index
    %43 = vector.load %arg9[%c0_39, %c128_40] : memref<64x256xbf16, #tpu.memory_space<vmem>>, vector<64x128xbf16>
    tpu.vector_store %arg9[%c0_39, %c128_40], %39 {strides = array<i32>} : memref<64x256xbf16, #tpu.memory_space<vmem>>, vector<64x128xbf16>,
    %c0_41 = arith.constant 0 : index
    %c0_42 = arith.constant 0 : index
    %44 = vector.load %arg9[%c0_41, %c0_42] : memref<64x256xbf16, #tpu.memory_space<vmem>>, vector<64x256xbf16>
    %c0_43 = arith.constant 0 : index
    %c0_44 = arith.constant 0 : index
    %45 = vector.load %arg6[%c0_43, %c0_44] : memref<256x128xbf16, #tpu.memory_space<vmem>>, vector<256x128xbf16>
    %cst_45 = arith.constant dense<0.000000e+00> : vector<64x128xf32>
    %46 = tpu.matmul %44, %45, %cst_45 {dimension_numbers = #tpu.dot_dimension_numbers<[1], [0], [0], [1], [0, 0, 1, 1], [], []>} : vector<64x256xbf16>, vector<256x128xbf16>, vector<64x128xf32> -> vector<64x128xf32>
    %c0_46 = arith.constant 0 : index
    %c0_47 = arith.constant 0 : index
    %47 = vector.load %arg7[%c0_46, %c0_47] : memref<1x128xf32, #tpu.memory_space<vmem>>, vector<1x128xf32>
    %48 = vector.broadcast %47 : vector<1x128xf32> to vector<64x128xf32>
    %49 = arith.addf %46, %48 : vector<64x128xf32>
    %cst_48 = arith.constant dense<0xFF800000> : vector<64xf32>
    %50 = vector.multi_reduction <maximumf>, %49, %cst_48 [1] : vector<64x128xf32> to vector<64xf32>
    %51 = vector.shape_cast %50 : vector<64xf32> to vector<64x1xf32>
    %52 = vector.broadcast %51 : vector<64x1xf32> to vector<64x128xf32>
    %53 = arith.subf %49, %52 : vector<64x128xf32>
    %54 = math.exp %53 : vector<64x128xf32>
    %cst_49 = arith.constant dense<0.000000e+00> : vector<64xf32>
    %55 = vector.multi_reduction <add>, %54, %cst_49 [1] : vector<64x128xf32> to vector<64xf32>
    %56 = vector.shape_cast %55 : vector<64xf32> to vector<64x1xf32>
    %57 = math.log %56 : vector<64x1xf32>
    %58 = vector.broadcast %57 : vector<64x1xf32> to vector<64x128xf32>
    %59 = arith.subf %53, %58 : vector<64x128xf32>
    %c0_50 = arith.constant 0 : index
    %c0_51 = arith.constant 0 : index
    %60 = vector.load %arg8[%c0_50, %c0_51] : memref<64x128xf32, #tpu.memory_space<vmem>>, vector<64x128xf32>
    tpu.vector_store %arg8[%c0_50, %c0_51], %59 {strides = array<i32>} : memref<64x128xf32, #tpu.memory_space<vmem>>, vector<64x128xf32>,
    return
  }
  func.func @transform_0(%arg0: i32) -> (i32, i32) {
    %c0_i32 = arith.constant 0 : i32
    %c0_i32_0 = arith.constant 0 : i32
    %c0_i32_1 = arith.constant 0 : i32
    return %c0_i32, %c0_i32_0 : i32, i32
  }
  func.func @transform_1(%arg0: i32) -> (i32, i32) {
    %c0_i32 = arith.constant 0 : i32
    %c0_i32_0 = arith.constant 0 : i32
    %c0_i32_1 = arith.constant 0 : i32
    return %c0_i32, %c0_i32_0 : i32, i32
  }
  func.func @transform_2(%arg0: i32) -> (i32, i32, i32) {
    %c0_i32 = arith.constant 0 : i32
    %c0_i32_0 = arith.constant 0 : i32
    %c0_i32_1 = arith.constant 0 : i32
    %c0_i32_2 = arith.constant 0 : i32
    return %c0_i32, %c0_i32_0, %c0_i32_1 : i32, i32, i32
  }
  func.func @transform_3(%arg0: i32) -> (i32, i32, i32) {
    %c0_i32 = arith.constant 0 : i32
    %c0_i32_0 = arith.constant 0 : i32
    %c0_i32_1 = arith.constant 0 : i32
    %c0_i32_2 = arith.constant 0 : i32
    return %c0_i32, %c0_i32_0, %c0_i32_1 : i32, i32, i32
  }
  func.func @transform_4(%arg0: i32) -> (i32, i32, i32) {
    %c0_i32 = arith.constant 0 : i32
    %c0_i32_0 = arith.constant 0 : i32
    %c0_i32_1 = arith.constant 0 : i32
    %c0_i32_2 = arith.constant 0 : i32
    return %c0_i32, %c0_i32_0, %c0_i32_1 : i32, i32, i32
  }
  func.func @transform_5(%arg0: i32) -> (i32, i32) {
    %c0_i32 = arith.constant 0 : i32
    %c0_i32_0 = arith.constant 0 : i32
    %c0_i32_1 = arith.constant 0 : i32
    return %c0_i32, %c0_i32_0 : i32, i32
  }
  func.func @transform_6(%arg0: i32) -> (i32, i32) {
    %c0_i32 = arith.constant 0 : i32
    %c0_i32_0 = arith.constant 0 : i32
    %c0_i32_1 = arith.constant 0 : i32
    return %c0_i32, %c0_i32_0 : i32, i32
  }
  func.func @transform_7(%arg0: i32) -> (i32, i32) {
    %c0_i32 = arith.constant 0 : i32
    %c0_i32_0 = arith.constant 0 : i32
    %c0_i32_1 = arith.constant 0 : i32
    return %c0_i32, %c0_i32_0 : i32, i32
  }
}

</mosaic_0001>

<llo_original>
// kernel: sage_forward.1
$region0: #{sage_forward.1}
  #allocation0 [shape = 'u32[]', space=smem, size = 0x4, offset = 0x4, fixed_abs, tag = 'smem constant byte address 0x4 - core index']
  #allocation1 [shape = 'u32[72,128]{1,0:T(1,128)}', space=vmem, size = 0x9000, scoped, tag = 'internal scratch']
  #allocation2 [shape = 'bf16[64,256]{1,0:T(8,128)(2,1)}', space=vmem, size = 0x8000, scoped, tag = 'scratch operand']
  %s0 = inlined_call_operand.vmem [shape: bf16[64,64], index: 0, kind: input, shape index: {}]
  %s1 = inlined_call_operand.vmem [shape: bf16[64,128], index: 1, kind: input, shape index: {}]
  %s2 = inlined_call_operand.hbm [shape: bf16[2,256,128], index: 2, kind: input, shape index: {}]
  %s3 = inlined_call_operand.vmem [shape: f32[2,1,128], index: 3, kind: input, shape index: {}]
  %s4 = inlined_call_operand.vmem [shape: f32[2,1,128], index: 4, kind: input, shape index: {}]
  %s5 = inlined_call_operand.vmem [shape: bf16[256,128], index: 5, kind: input, shape index: {}]
  %s6 = inlined_call_operand.vmem [shape: f32[1,128], index: 6, kind: input, shape index: {}]
  %s7 = inlined_call_operand.vmem [shape: f32[64,128], index: 7, kind: output, shape index: {}]
  %s8 = sld [smem:[#allocation0]]
  $region42: #{sage_forward.1} parent=0
    _
  %s10 = ssub.s32 1, %s8
  %s11 = scalar_select 0, %s10, %s8
  $region1: #{sage_forward.1} parent=0
    #allocation3 [shape = 'u8[131072]{0}', space=vmem, size = 0x20000, scoped, tag = 'input window, operand 2, single buffered']
    #allocation4 [shape = 's32[1]{0}', space=sflag, size = 0x4, scoped, tag = 'scoped memory for sage_forward.1']
    %12 = vsyncpa [#allocation4], 0
    // Predicated region
    $region2: #{sage_forward.1} parent=1 // pred_check
      _
    $region3: #{sage_forward.1} parent=1 // pred_check_branch
      %14 = sbr.rel (0) target = $region5
    $region4: #{sage_forward.1} parent=1 // pred_region
      _
    $region5: #{sage_forward.1} parent=1 // pred_fallthru
      _
    // Predicated region
    $region6: #{sage_forward.1} parent=1 // pred_check
      _
    $region7: #{sage_forward.1} parent=1 // pred_check_branch
      %16 = sbr.rel (0) target = $region9
    $region8: #{sage_forward.1} parent=1 // pred_region
      _
    $region9: #{sage_forward.1} parent=1 // pred_fallthru
      _
    // Predicated region
    $region10: #{sage_forward.1} parent=1 // pred_check
      _
    $region11: #{sage_forward.1} parent=1 // pred_check_branch
      %18 = sbr.rel (0) target = $region13
    $region12: #{sage_forward.1} parent=1 // pred_region
      %20 = vsyncadd [#allocation4], 0
      %s21 = sshll.u32 %s2, 4
      %s22 = int_to_ptr.hbm [resolvable:$true] %s21
      %s23 = sshll.u32 [#allocation3], 4
      %s24 = int_to_ptr.vmem [resolvable:$true] %s23
      %29 = dma.hbm_to_vmem [thread:$0]  %s22, 4096, %s24, [#allocation4], 64, 64, 4
    $region13: #{sage_forward.1} parent=1 // pred_fallthru
      _
    // Predicated region
    $region14: #{sage_forward.1} parent=1 // pred_check
      _
    $region15: #{sage_forward.1} parent=1 // pred_check_branch
      %31 = sbr.rel (0) target = $region17
    $region16: #{sage_forward.1} parent=1 // pred_region
      _
    $region17: #{sage_forward.1} parent=1 // pred_fallthru
      _
    // Predicated region
    $region18: #{sage_forward.1} parent=1 // pred_check
      _
    $region19: #{sage_forward.1} parent=1 // pred_check_branch
      %33 = sbr.rel (0) target = $region21
    $region20: #{sage_forward.1} parent=1 // pred_region
      _
    $region21: #{sage_forward.1} parent=1 // pred_fallthru
      _
    // Predicated region
    $region22: #{sage_forward.1} parent=1 // pred_check
      _
    $region23: #{sage_forward.1} parent=1 // pred_check_branch
      %35 = sbr.rel (0) target = $region25
    $region24: #{sage_forward.1} parent=1 // pred_region
      _
    $region25: #{sage_forward.1} parent=1 // pred_fallthru
      _
    // Predicated region
    $region26: #{sage_forward.1} parent=1 // pred_check
      _
    $region27: #{sage_forward.1} parent=1 // pred_check_branch
      %37 = sbr.rel (0) target = $region29
    $region28: #{sage_forward.1} parent=1 // pred_region
      _
    $region29: #{sage_forward.1} parent=1 // pred_fallthru
      _
    // Predicated region
    $region30: #{sage_forward.1} parent=1 // pred_check
      _
    $region31: #{sage_forward.1} parent=1 // pred_check_branch
      %39 = sbr.rel (0) target = $region33
    $region32: #{sage_forward.1} parent=1 // pred_region
      %41 = dma.done [#allocation4], 4096
    $region33: #{sage_forward.1} parent=1 // pred_fallthru
      _
    %v43 = vld [vmem:[%s0] sm:$0xf]
    %v44 = vld [vmem:[%s0 + $0x4] sm:$0xf]
    %v45 = vld [vmem:[%s0 + $0x8] sm:$0xf]
    %v46 = vld [vmem:[%s0 + $0xc] sm:$0xf]
    %v47 = vld [vmem:[%s0 + $0x10] sm:$0xf]
    %v48 = vld [vmem:[%s0 + $0x14] sm:$0xf]
    %v49 = vld [vmem:[%s0 + $0x18] sm:$0xf]
    %v50 = vld [vmem:[%s0 + $0x1c] sm:$0xf]
    %v51 = vld [vmem:[%s1] sm:$0xf]
    %v52 = vld [vmem:[%s1 + $0x4] sm:$0xf]
    %v53 = vld [vmem:[%s1 + $0x8] sm:$0xf]
    %v54 = vld [vmem:[%s1 + $0xc] sm:$0xf]
    %v55 = vld [vmem:[%s1 + $0x10] sm:$0xf]
    %v56 = vld [vmem:[%s1 + $0x14] sm:$0xf]
    %v57 = vld [vmem:[%s1 + $0x18] sm:$0xf]
    %v58 = vld [vmem:[%s1 + $0x1c] sm:$0xf]
    %v67 = vunpack.c.l.b16 %v43
    %v68 = vunpack.c.l.b16 %v44
    %v69 = vunpack.c.l.b16 %v45
    %v70 = vunpack.c.l.b16 %v46
    %v71 = vunpack.c.l.b16 %v47
    %v72 = vunpack.c.l.b16 %v48
    %v73 = vunpack.c.l.b16 %v49
    %v74 = vunpack.c.l.b16 %v50
    %v75 = vpack.c.b16 %v68, %v67
    %v76 = vpack.c.b16 %v70, %v69
    %v77 = vpack.c.b16 %v72, %v71
    %v78 = vpack.c.b16 %v74, %v73
    %v87 = vunpack.c.l.b16 %v51
    %v88 = vunpack.c.l.b16 %v52
    %v89 = vunpack.c.l.b16 %v53
    %v90 = vunpack.c.l.b16 %v54
    %v91 = vunpack.c.l.b16 %v55
    %v92 = vunpack.c.l.b16 %v56
    %v93 = vunpack.c.l.b16 %v57
    %v94 = vunpack.c.l.b16 %v58
    %v95 = vpack.c.b16 %v88, %v87
    %v96 = vpack.c.b16 %v90, %v89
    %v97 = vpack.c.b16 %v92, %v91
    %v98 = vpack.c.b16 %v94, %v93
    %vm103 = vcmask 523264
    %v105 = vsel %vm103, %v75, 0
    %v108 = vsel %vm103, %v76, 0
    %v111 = vsel %vm103, %v77, 0
    %v114 = vsel %vm103, %v78, 0
    %116 = vmatpush.bf16.msra.mxu0 0
    %117 = vmatpush.bf16.msra.mxu0 0
    %118 = vmatpush.bf16.msra.mxu0 0
    %119 = vmatpush.bf16.msra.mxu0 0
    %120 = vmatpush.bf16.msra.mxu0 %v98
    %121 = vmatpush.bf16.msra.mxu0 %v97
    %122 = vmatpush.bf16.msra.mxu0 %v96
    %123 = vmatpush.bf16.msra.mxu0 %v95
    %124 = vmatmul.bf16.gmra.mxu0 %v105
    %v125 = vpop.f32.mrf.mxu0
    %v126 = vadd.f32 0.0, %v125
    %v127 = vpop.f32.mrf.mxu0
    %v128 = vadd.f32 0.0, %v127
    %129 = vmatmul.bf16.gmra.mxu0 %v108
    %v130 = vpop.f32.mrf.mxu0
    %v131 = vadd.f32 0.0, %v130
    %v132 = vpop.f32.mrf.mxu0
    %v133 = vadd.f32 0.0, %v132
    %134 = vmatmul.bf16.gmra.mxu0 %v111
    %v135 = vpop.f32.mrf.mxu0
    %v136 = vadd.f32 0.0, %v135
    %v137 = vpop.f32.mrf.mxu0
    %v138 = vadd.f32 0.0, %v137
    %139 = vmatmul.bf16.gmra.mxu0 %v114
    %v140 = vpop.f32.mrf.mxu0
    %v141 = vadd.f32 0.0, %v140
    %v142 = vpop.f32.mrf.mxu0
    %v143 = vadd.f32 0.0, %v142
    %144 = vdwg.mxu0
    %v145 = vpack.c.bf16 %v126, %v126
    %v146 = vpack.c.bf16 %v128, %v128
    %v147 = vpack.c.bf16 %v131, %v131
    %v148 = vpack.c.bf16 %v133, %v133
    %v149 = vpack.c.bf16 %v136, %v136
    %v150 = vpack.c.bf16 %v138, %v138
    %v151 = vpack.c.bf16 %v141, %v141
    %v152 = vpack.c.bf16 %v143, %v143
    %153 = vst [vmem:[#allocation2] sm:$0xf] %v145
    %154 = vst [vmem:[#allocation2 + $0x8] sm:$0xf] %v146
    %155 = vst [vmem:[#allocation2 + $0x10] sm:$0xf] %v147
    %156 = vst [vmem:[#allocation2 + $0x18] sm:$0xf] %v148
    %157 = vst [vmem:[#allocation2 + $0x20] sm:$0xf] %v149
    %158 = vst [vmem:[#allocation2 + $0x28] sm:$0xf] %v150
    %159 = vst [vmem:[#allocation2 + $0x30] sm:$0xf] %v151
    %160 = vst [vmem:[#allocation2 + $0x38] sm:$0xf] %v152
    %161 = vst [vmem:[#allocation2 + $0x4] sm:$0xf] %v51
    %162 = vst [vmem:[#allocation2 + $0xc] sm:$0xf] %v52
    %163 = vst [vmem:[#allocation2 + $0x14] sm:$0xf] %v53
    %164 = vst [vmem:[#allocation2 + $0x1c] sm:$0xf] %v54
    %165 = vst [vmem:[#allocation2 + $0x24] sm:$0xf] %v55
    %166 = vst [vmem:[#allocation2 + $0x2c] sm:$0xf] %v56
    %167 = vst [vmem:[#allocation2 + $0x34] sm:$0xf] %v57
    %168 = vst [vmem:[#allocation2 + $0x3c] sm:$0xf] %v58
    %v169 = vld [vmem:[#allocation2] sm:$0xff]
    %v170 = vld [vmem:[#allocation2 + $0x8] sm:$0xff]
    %v171 = vld [vmem:[#allocation2 + $0x10] sm:$0xff]
    %v172 = vld [vmem:[#allocation2 + $0x18] sm:$0xff]
    %v173 = vld [vmem:[#allocation2 + $0x20] sm:$0xff]
    %v174 = vld [vmem:[#allocation2 + $0x28] sm:$0xff]
    %v175 = vld [vmem:[#allocation2 + $0x30] sm:$0xff]
    %v176 = vld [vmem:[#allocation2 + $0x38] sm:$0xff]
    %v177 = vld [vmem:[#allocation3] sm:$0xf]
    %v178 = vld [vmem:[#allocation3 + $0x4] sm:$0xf]
    %v179 = vld [vmem:[#allocation3 + $0x8] sm:$0xf]
    %v180 = vld [vmem:[#allocation3 + $0xc] sm:$0xf]
    %v181 = vld [vmem:[#allocation3 + $0x10] sm:$0xf]
    %v182 = vld [vmem:[#allocation3 + $0x14] sm:$0xf]
    %v183 = vld [vmem:[#allocation3 + $0x18] sm:$0xf]
    %v184 = vld [vmem:[#allocation3 + $0x1c] sm:$0xf]
    %v185 = vld [vmem:[#allocation3 + $0x20] sm:$0xf]
    %v186 = vld [vmem:[#allocation3 + $0x24] sm:$0xf]
    %v187 = vld [vmem:[#allocation3 + $0x28] sm:$0xf]
    %v188 = vld [vmem:[#allocation3 + $0x2c] sm:$0xf]
    %v189 = vld [vmem:[#allocation3 + $0x30] sm:$0xf]
    %v190 = vld [vmem:[#allocation3 + $0x34] sm:$0xf]
    %v191 = vld [vmem:[#allocation3 + $0x38] sm:$0xf]
    %v192 = vld [vmem:[#allocation3 + $0x3c] sm:$0xf]
    %v193 = vld [vmem:[#allocation3 + $0x40] sm:$0xf]
    %v194 = vld [vmem:[#allocation3 + $0x44] sm:$0xf]
    %v195 = vld [vmem:[#allocation3 + $0x48] sm:$0xf]
    %v196 = vld [vmem:[#allocation3 + $0x4c] sm:$0xf]
    %v197 = vld [vmem:[#allocation3 + $0x50] sm:$0xf]
    %v198 = vld [vmem:[#allocation3 + $0x54] sm:$0xf]
    %v199 = vld [vmem:[#allocation3 + $0x58] sm:$0xf]
    %v200 = vld [vmem:[#allocation3 + $0x5c] sm:$0xf]
    %v201 = vld [vmem:[#allocation3 + $0x60] sm:$0xf]
    %v202 = vld [vmem:[#allocation3 + $0x64] sm:$0xf]
    %v203 = vld [vmem:[#allocation3 + $0x68] sm:$0xf]
    %v204 = vld [vmem:[#allocation3 + $0x6c] sm:$0xf]
    %v205 = vld [vmem:[#allocation3 + $0x70] sm:$0xf]
    %v206 = vld [vmem:[#allocation3 + $0x74] sm:$0xf]
    %v207 = vld [vmem:[#allocation3 + $0x78] sm:$0xf]
    %v208 = vld [vmem:[#allocation3 + $0x7c] sm:$0xf]
    %v217 = vunpack.c.l.b16 %v169
    %v218 = vunpack.c.h.b16 %v169
    %v219 = vunpack.c.l.b16 %v170
    %v220 = vunpack.c.h.b16 %v170
    %v221 = vunpack.c.l.b16 %v171
    %v222 = vunpack.c.h.b16 %v171
    %v223 = vunpack.c.l.b16 %v172
    %v224 = vunpack.c.h.b16 %v172
    %v225 = vunpack.c.l.b16 %v173
    %v226 = vunpack.c.h.b16 %v173
    %v227 = vunpack.c.l.b16 %v174
    %v228 = vunpack.c.h.b16 %v174
    %v229 = vunpack.c.l.b16 %v175
    %v230 = vunpack.c.h.b16 %v175
    %v231 = vunpack.c.l.b16 %v176
    %v232 = vunpack.c.h.b16 %v176
    %v233 = vpack.c.b16 %v219, %v217
    %v234 = vpack.c.b16 %v220, %v218
    %v235 = vpack.c.b16 %v223, %v221
    %v236 = vpack.c.b16 %v224, %v222
    %v237 = vpack.c.b16 %v227, %v225
    %v238 = vpack.c.b16 %v228, %v226
    %v239 = vpack.c.b16 %v231, %v229
    %v240 = vpack.c.b16 %v232, %v230
    %v281 = vunpack.c.l.b16 %v177
    %v282 = vunpack.c.l.b16 %v178
    %v283 = vunpack.c.l.b16 %v179
    %v284 = vunpack.c.l.b16 %v180
    %v285 = vunpack.c.l.b16 %v181
    %v286 = vunpack.c.l.b16 %v182
    %v287 = vunpack.c.l.b16 %v183
    %v288 = vunpack.c.l.b16 %v184
    %v289 = vunpack.c.l.b16 %v185
    %v290 = vunpack.c.l.b16 %v186
    %v291 = vunpack.c.l.b16 %v187
    %v292 = vunpack.c.l.b16 %v188
    %v293 = vunpack.c.l.b16 %v189
    %v294 = vunpack.c.l.b16 %v190
    %v295 = vunpack.c.l.b16 %v191
    %v296 = vunpack.c.l.b16 %v192
    %v297 = vunpack.c.l.b16 %v193
    %v298 = vunpack.c.l.b16 %v194
    %v299 = vunpack.c.l.b16 %v195
    %v300 = vunpack.c.l.b16 %v196
    %v301 = vunpack.c.l.b16 %v197
    %v302 = vunpack.c.l.b16 %v198
    %v303 = vunpack.c.l.b16 %v199
    %v304 = vunpack.c.l.b16 %v200
    %v305 = vunpack.c.l.b16 %v201
    %v306 = vunpack.c.l.b16 %v202
    %v307 = vunpack.c.l.b16 %v203
    %v308 = vunpack.c.l.b16 %v204
    %v309 = vunpack.c.l.b16 %v205
    %v310 = vunpack.c.l.b16 %v206
    %v311 = vunpack.c.l.b16 %v207
    %v312 = vunpack.c.l.b16 %v208
    %v313 = vpack.c.b16 %v282, %v281
    %v314 = vpack.c.b16 %v284, %v283
    %v315 = vpack.c.b16 %v286, %v285
    %v316 = vpack.c.b16 %v288, %v287
    %v317 = vpack.c.b16 %v290, %v289
    %v318 = vpack.c.b16 %v292, %v291
    %v319 = vpack.c.b16 %v294, %v293
    %v320 = vpack.c.b16 %v296, %v295
    %v321 = vpack.c.b16 %v298, %v297
    %v322 = vpack.c.b16 %v300, %v299
    %v323 = vpack.c.b16 %v302, %v301
    %v324 = vpack.c.b16 %v304, %v303
    %v325 = vpack.c.b16 %v306, %v305
    %v326 = vpack.c.b16 %v308, %v307
    %v327 = vpack.c.b16 %v310, %v309
    %v328 = vpack.c.b16 %v312, %v311
    %345 = vmatpush.bf16.msra.mxu0 %v320
    %346 = vmatpush.bf16.msra.mxu0 %v319
    %347 = vmatpush.bf16.msra.mxu0 %v318
    %348 = vmatpush.bf16.msra.mxu0 %v317
    %349 = vmatpush.bf16.msra.mxu0 %v316
    %350 = vmatpush.bf16.msra.mxu0 %v315
    %351 = vmatpush.bf16.msra.mxu0 %v314
    %352 = vmatpush.bf16.msra.mxu0 %v313
    %353 = vmatmul.bf16.gmra.mxu0 %v233
    %v354 = vpop.f32.mrf.mxu0
    %v355 = vadd.f32 0.0, %v354
    %v356 = vpop.f32.mrf.mxu0
    %v357 = vadd.f32 0.0, %v356
    %358 = vmatmul.bf16.gmra.mxu0 %v235
    %v359 = vpop.f32.mrf.mxu0
    %v360 = vadd.f32 0.0, %v359
    %v361 = vpop.f32.mrf.mxu0
    %v362 = vadd.f32 0.0, %v361
    %363 = vmatmul.bf16.gmra.mxu0 %v237
    %v364 = vpop.f32.mrf.mxu0
    %v365 = vadd.f32 0.0, %v364
    %v366 = vpop.f32.mrf.mxu0
    %v367 = vadd.f32 0.0, %v366
    %368 = vmatmul.bf16.gmra.mxu0 %v239
    %v369 = vpop.f32.mrf.mxu0
    %v370 = vadd.f32 0.0, %v369
    %v371 = vpop.f32.mrf.mxu0
    %v372 = vadd.f32 0.0, %v371
    %373 = vdwg.mxu0
    %374 = vmatpush.bf16.msra.mxu0 %v328
    %375 = vmatpush.bf16.msra.mxu0 %v327
    %376 = vmatpush.bf16.msra.mxu0 %v326
    %377 = vmatpush.bf16.msra.mxu0 %v325
    %378 = vmatpush.bf16.msra.mxu0 %v324
    %379 = vmatpush.bf16.msra.mxu0 %v323
    %380 = vmatpush.bf16.msra.mxu0 %v322
    %381 = vmatpush.bf16.msra.mxu0 %v321
    %382 = vmatmul.bf16.gmra.mxu0 %v234
    %v383 = vpop.f32.mrf.mxu0
    %v384 = vadd.f32 %v355, %v383
    %v385 = vpop.f32.mrf.mxu0
    %v386 = vadd.f32 %v357, %v385
    %387 = vmatmul.bf16.gmra.mxu0 %v236
    %v388 = vpop.f32.mrf.mxu0
    %v389 = vadd.f32 %v360, %v388
    %v390 = vpop.f32.mrf.mxu0
    %v391 = vadd.f32 %v362, %v390
    %392 = vmatmul.bf16.gmra.mxu0 %v238
    %v393 = vpop.f32.mrf.mxu0
    %v394 = vadd.f32 %v365, %v393
    %v395 = vpop.f32.mrf.mxu0
    %v396 = vadd.f32 %v367, %v395
    %397 = vmatmul.bf16.gmra.mxu0 %v240
    %v398 = vpop.f32.mrf.mxu0
    %v399 = vadd.f32 %v370, %v398
    %v400 = vpop.f32.mrf.mxu0
    %v401 = vadd.f32 %v372, %v400
    %402 = vdwg.mxu0
    %v403 = vld [vmem:[%s3] sm:$0x1]
    %v405 = vperm.slane %v403, 0
    %v407 = vmul.f32 %v384, %v405
    %v408 = vmul.f32 %v386, %v405
    %v409 = vmul.f32 %v389, %v405
    %v410 = vmul.f32 %v391, %v405
    %v411 = vmul.f32 %v394, %v405
    %v412 = vmul.f32 %v396, %v405
    %v413 = vmul.f32 %v399, %v405
    %v414 = vmul.f32 %v401, %v405
    %v415 = vld [vmem:[%s4] sm:$0x1]
    %v417 = vperm.slane %v415, 0
    %v419 = vadd.f32 %v407, %v417
    %v420 = vadd.f32 %v408, %v417
    %v421 = vadd.f32 %v409, %v417
    %v422 = vadd.f32 %v410, %v417
    %v423 = vadd.f32 %v411, %v417
    %v424 = vadd.f32 %v412, %v417
    %v425 = vadd.f32 %v413, %v417
    %v426 = vadd.f32 %v414, %v417
    %v427 = vmax.f32 %v419, 0.0
    %v428 = vmax.f32 %v420, 0.0
    %v429 = vmax.f32 %v421, 0.0
    %v430 = vmax.f32 %v422, 0.0
    %v431 = vmax.f32 %v423, 0.0
    %v432 = vmax.f32 %v424, 0.0
    %v433 = vmax.f32 %v425, 0.0
    %v434 = vmax.f32 %v426, 0.0
    %v435 = vpack.c.bf16 %v427, %v427
    %v436 = vpack.c.bf16 %v428, %v428
    %v437 = vpack.c.bf16 %v429, %v429
    %v438 = vpack.c.bf16 %v430, %v430
    %v439 = vpack.c.bf16 %v431, %v431
    %v440 = vpack.c.bf16 %v432, %v432
    %v441 = vpack.c.bf16 %v433, %v433
    %v442 = vpack.c.bf16 %v434, %v434
    %v451 = vunpack.c.l.b16 %v435
    %v452 = vunpack.c.l.b16 %v436
    %v453 = vunpack.c.l.b16 %v437
    %v454 = vunpack.c.l.b16 %v438
    %v455 = vunpack.c.l.b16 %v439
    %v456 = vunpack.c.l.b16 %v440
    %v457 = vunpack.c.l.b16 %v441
    %v458 = vunpack.c.l.b16 %v442
    %v459 = vpack.c.b16 %v452, %v451
    %v460 = vpack.c.b16 %v454, %v453
    %v461 = vpack.c.b16 %v456, %v455
    %v462 = vpack.c.b16 %v458, %v457
    %467 = vmatpush.bf16.msra.mxu0 0
    %468 = vmatpush.bf16.msra.mxu0 0
    %469 = vmatpush.bf16.msra.mxu0 0
    %470 = vmatpush.bf16.msra.mxu0 0
    %471 = vmatpush.bf16.msra.mxu0 %v462
    %472 = vmatpush.bf16.msra.mxu0 %v461
    %473 = vmatpush.bf16.msra.mxu0 %v460
    %474 = vmatpush.bf16.msra.mxu0 %v459
    %475 = vmatmul.bf16.gmra.mxu0 %v105
    %v476 = vpop.f32.mrf.mxu0
    %v477 = vadd.f32 0.0, %v476
    %v478 = vpop.f32.mrf.mxu0
    %v479 = vadd.f32 0.0, %v478
    %480 = vmatmul.bf16.gmra.mxu0 %v108
    %v481 = vpop.f32.mrf.mxu0
    %v482 = vadd.f32 0.0, %v481
    %v483 = vpop.f32.mrf.mxu0
    %v484 = vadd.f32 0.0, %v483
    %485 = vmatmul.bf16.gmra.mxu0 %v111
    %v486 = vpop.f32.mrf.mxu0
    %v487 = vadd.f32 0.0, %v486
    %v488 = vpop.f32.mrf.mxu0
    %v489 = vadd.f32 0.0, %v488
    %490 = vmatmul.bf16.gmra.mxu0 %v114
    %v491 = vpop.f32.mrf.mxu0
    %v492 = vadd.f32 0.0, %v491
    %v493 = vpop.f32.mrf.mxu0
    %v494 = vadd.f32 0.0, %v493
    %495 = vdwg.mxu0
    %v496 = vpack.c.bf16 %v477, %v477
    %v497 = vpack.c.bf16 %v479, %v479
    %v498 = vpack.c.bf16 %v482, %v482
    %v499 = vpack.c.bf16 %v484, %v484
    %v500 = vpack.c.bf16 %v487, %v487
    %v501 = vpack.c.bf16 %v489, %v489
    %v502 = vpack.c.bf16 %v492, %v492
    %v503 = vpack.c.bf16 %v494, %v494
    %504 = vst [vmem:[#allocation2] sm:$0xf] %v496
    %505 = vst [vmem:[#allocation2 + $0x8] sm:$0xf] %v497
    %506 = vst [vmem:[#allocation2 + $0x10] sm:$0xf] %v498
    %507 = vst [vmem:[#allocation2 + $0x18] sm:$0xf] %v499
    %508 = vst [vmem:[#allocation2 + $0x20] sm:$0xf] %v500
    %509 = vst [vmem:[#allocation2 + $0x28] sm:$0xf] %v501
    %510 = vst [vmem:[#allocation2 + $0x30] sm:$0xf] %v502
    %511 = vst [vmem:[#allocation2 + $0x38] sm:$0xf] %v503
    %512 = vst [vmem:[#allocation2 + $0x4] sm:$0xf] %v435
    %513 = vst [vmem:[#allocation2 + $0xc] sm:$0xf] %v436
    %514 = vst [vmem:[#allocation2 + $0x14] sm:$0xf] %v437
    %515 = vst [vmem:[#allocation2 + $0x1c] sm:$0xf] %v438
    %516 = vst [vmem:[#allocation2 + $0x24] sm:$0xf] %v439
    %517 = vst [vmem:[#allocation2 + $0x2c] sm:$0xf] %v440
    %518 = vst [vmem:[#allocation2 + $0x34] sm:$0xf] %v441
    %519 = vst [vmem:[#allocation2 + $0x3c] sm:$0xf] %v442
    %v520 = vld [vmem:[#allocation2] sm:$0xff]
    %v521 = vld [vmem:[#allocation2 + $0x8] sm:$0xff]
    %v522 = vld [vmem:[#allocation2 + $0x10] sm:$0xff]
    %v523 = vld [vmem:[#allocation2 + $0x18] sm:$0xff]
    %v524 = vld [vmem:[#allocation2 + $0x20] sm:$0xff]
    %v525 = vld [vmem:[#allocation2 + $0x28] sm:$0xff]
    %v526 = vld [vmem:[#allocation2 + $0x30] sm:$0xff]
    %v527 = vld [vmem:[#allocation2 + $0x38] sm:$0xff]
    %s528 = scalar_lea.vmem [#allocation3], 128
    %v529 = vld [vmem:[%s528] sm:$0xf]
    %v530 = vld [vmem:[%s528 + $0x4] sm:$0xf]
    %v531 = vld [vmem:[%s528 + $0x8] sm:$0xf]
    %v532 = vld [vmem:[%s528 + $0xc] sm:$0xf]
    %v533 = vld [vmem:[%s528 + $0x10] sm:$0xf]
    %v534 = vld [vmem:[%s528 + $0x14] sm:$0xf]
    %v535 = vld [vmem:[%s528 + $0x18] sm:$0xf]
    %v536 = vld [vmem:[%s528 + $0x1c] sm:$0xf]
    %v537 = vld [vmem:[%s528 + $0x20] sm:$0xf]
    %v538 = vld [vmem:[%s528 + $0x24] sm:$0xf]
    %v539 = vld [vmem:[%s528 + $0x28] sm:$0xf]
    %v540 = vld [vmem:[%s528 + $0x2c] sm:$0xf]
    %v541 = vld [vmem:[%s528 + $0x30] sm:$0xf]
    %v542 = vld [vmem:[%s528 + $0x34] sm:$0xf]
    %v543 = vld [vmem:[%s528 + $0x38] sm:$0xf]
    %v544 = vld [vmem:[%s528 + $0x3c] sm:$0xf]
    %v545 = vld [vmem:[%s528 + $0x40] sm:$0xf]
    %v546 = vld [vmem:[%s528 + $0x44] sm:$0xf]
    %v547 = vld [vmem:[%s528 + $0x48] sm:$0xf]
    %v548 = vld [vmem:[%s528 + $0x4c] sm:$0xf]
    %v549 = vld [vmem:[%s528 + $0x50] sm:$0xf]
    %v550 = vld [vmem:[%s528 + $0x54] sm:$0xf]
    %v551 = vld [vmem:[%s528 + $0x58] sm:$0xf]
    %v552 = vld [vmem:[%s528 + $0x5c] sm:$0xf]
    %v553 = vld [vmem:[%s528 + $0x60] sm:$0xf]
    %v554 = vld [vmem:[%s528 + $0x64] sm:$0xf]
    %v555 = vld [vmem:[%s528 + $0x68] sm:$0xf]
    %v556 = vld [vmem:[%s528 + $0x6c] sm:$0xf]
    %v557 = vld [vmem:[%s528 + $0x70] sm:$0xf]
    %v558 = vld [vmem:[%s528 + $0x74] sm:$0xf]
    %v559 = vld [vmem:[%s528 + $0x78] sm:$0xf]
    %v560 = vld [vmem:[%s528 + $0x7c] sm:$0xf]
    %v569 = vunpack.c.l.b16 %v520
    %v570 = vunpack.c.h.b16 %v520
    %v571 = vunpack.c.l.b16 %v521
    %v572 = vunpack.c.h.b16 %v521
    %v573 = vunpack.c.l.b16 %v522
    %v574 = vunpack.c.h.b16 %v522
    %v575 = vunpack.c.l.b16 %v523
    %v576 = vunpack.c.h.b16 %v523
    %v577 = vunpack.c.l.b16 %v524
    %v578 = vunpack.c.h.b16 %v524
    %v579 = vunpack.c.l.b16 %v525
    %v580 = vunpack.c.h.b16 %v525
    %v581 = vunpack.c.l.b16 %v526
    %v582 = vunpack.c.h.b16 %v526
    %v583 = vunpack.c.l.b16 %v527
    %v584 = vunpack.c.h.b16 %v527
    %v585 = vpack.c.b16 %v571, %v569
    %v586 = vpack.c.b16 %v572, %v570
    %v587 = vpack.c.b16 %v575, %v573
    %v588 = vpack.c.b16 %v576, %v574
    %v589 = vpack.c.b16 %v579, %v577
    %v590 = vpack.c.b16 %v580, %v578
    %v591 = vpack.c.b16 %v583, %v581
    %v592 = vpack.c.b16 %v584, %v582
    %v633 = vunpack.c.l.b16 %v529
    %v634 = vunpack.c.l.b16 %v530
    %v635 = vunpack.c.l.b16 %v531
    %v636 = vunpack.c.l.b16 %v532
    %v637 = vunpack.c.l.b16 %v533
    %v638 = vunpack.c.l.b16 %v534
    %v639 = vunpack.c.l.b16 %v535
    %v640 = vunpack.c.l.b16 %v536
    %v641 = vunpack.c.l.b16 %v537
    %v642 = vunpack.c.l.b16 %v538
    %v643 = vunpack.c.l.b16 %v539
    %v644 = vunpack.c.l.b16 %v540
    %v645 = vunpack.c.l.b16 %v541
    %v646 = vunpack.c.l.b16 %v542
    %v647 = vunpack.c.l.b16 %v543
    %v648 = vunpack.c.l.b16 %v544
    %v649 = vunpack.c.l.b16 %v545
    %v650 = vunpack.c.l.b16 %v546
    %v651 = vunpack.c.l.b16 %v547
    %v652 = vunpack.c.l.b16 %v548
    %v653 = vunpack.c.l.b16 %v549
    %v654 = vunpack.c.l.b16 %v550
    %v655 = vunpack.c.l.b16 %v551
    %v656 = vunpack.c.l.b16 %v552
    %v657 = vunpack.c.l.b16 %v553
    %v658 = vunpack.c.l.b16 %v554
    %v659 = vunpack.c.l.b16 %v555
    %v660 = vunpack.c.l.b16 %v556
    %v661 = vunpack.c.l.b16 %v557
    %v662 = vunpack.c.l.b16 %v558
    %v663 = vunpack.c.l.b16 %v559
    %v664 = vunpack.c.l.b16 %v560
    %v665 = vpack.c.b16 %v634, %v633
    %v666 = vpack.c.b16 %v636, %v635
    %v667 = vpack.c.b16 %v638, %v637
    %v668 = vpack.c.b16 %v640, %v639
    %v669 = vpack.c.b16 %v642, %v641
    %v670 = vpack.c.b16 %v644, %v643
    %v671 = vpack.c.b16 %v646, %v645
    %v672 = vpack.c.b16 %v648, %v647
    %v673 = vpack.c.b16 %v650, %v649
    %v674 = vpack.c.b16 %v652, %v651
    %v675 = vpack.c.b16 %v654, %v653
    %v676 = vpack.c.b16 %v656, %v655
    %v677 = vpack.c.b16 %v658, %v657
    %v678 = vpack.c.b16 %v660, %v659
    %v679 = vpack.c.b16 %v662, %v661
    %v680 = vpack.c.b16 %v664, %v663
    %697 = vmatpush.bf16.msra.mxu0 %v672
    %698 = vmatpush.bf16.msra.mxu0 %v671
    %699 = vmatpush.bf16.msra.mxu0 %v670
    %700 = vmatpush.bf16.msra.mxu0 %v669
    %701 = vmatpush.bf16.msra.mxu0 %v668
    %702 = vmatpush.bf16.msra.mxu0 %v667
    %703 = vmatpush.bf16.msra.mxu0 %v666
    %704 = vmatpush.bf16.msra.mxu0 %v665
    %705 = vmatmul.bf16.gmra.mxu0 %v585
    %v706 = vpop.f32.mrf.mxu0
    %v707 = vadd.f32 0.0, %v706
    %v708 = vpop.f32.mrf.mxu0
    %v709 = vadd.f32 0.0, %v708
    %710 = vmatmul.bf16.gmra.mxu0 %v587
    %v711 = vpop.f32.mrf.mxu0
    %v712 = vadd.f32 0.0, %v711
    %v713 = vpop.f32.mrf.mxu0
    %v714 = vadd.f32 0.0, %v713
    %715 = vmatmul.bf16.gmra.mxu0 %v589
    %v716 = vpop.f32.mrf.mxu0
    %v717 = vadd.f32 0.0, %v716
    %v718 = vpop.f32.mrf.mxu0
    %v719 = vadd.f32 0.0, %v718
    %720 = vmatmul.bf16.gmra.mxu0 %v591
    %v721 = vpop.f32.mrf.mxu0
    %v722 = vadd.f32 0.0, %v721
    %v723 = vpop.f32.mrf.mxu0
    %v724 = vadd.f32 0.0, %v723
    %725 = vdwg.mxu0
    %726 = vmatpush.bf16.msra.mxu0 %v680
    %727 = vmatpush.bf16.msra.mxu0 %v679
    %728 = vmatpush.bf16.msra.mxu0 %v678
    %729 = vmatpush.bf16.msra.mxu0 %v677
    %730 = vmatpush.bf16.msra.mxu0 %v676
    %731 = vmatpush.bf16.msra.mxu0 %v675
    %732 = vmatpush.bf16.msra.mxu0 %v674
    %733 = vmatpush.bf16.msra.mxu0 %v673
    %734 = vmatmul.bf16.gmra.mxu0 %v586
    %v735 = vpop.f32.mrf.mxu0
    %v736 = vadd.f32 %v707, %v735
    %v737 = vpop.f32.mrf.mxu0
    %v738 = vadd.f32 %v709, %v737
    %739 = vmatmul.bf16.gmra.mxu0 %v588
    %v740 = vpop.f32.mrf.mxu0
    %v741 = vadd.f32 %v712, %v740
    %v742 = vpop.f32.mrf.mxu0
    %v743 = vadd.f32 %v714, %v742
    %744 = vmatmul.bf16.gmra.mxu0 %v590
    %v745 = vpop.f32.mrf.mxu0
    %v746 = vadd.f32 %v717, %v745
    %v747 = vpop.f32.mrf.mxu0
    %v748 = vadd.f32 %v719, %v747
    %749 = vmatmul.bf16.gmra.mxu0 %v592
    %v750 = vpop.f32.mrf.mxu0
    %v751 = vadd.f32 %v722, %v750
    %v752 = vpop.f32.mrf.mxu0
    %v753 = vadd.f32 %v724, %v752
    %754 = vdwg.mxu0
    %s755 = scalar_lea.vmem %s3, 1
    %v756 = vld [vmem:[%s755] sm:$0x1]
    %v758 = vperm.slane %v756, 0
    %v760 = vmul.f32 %v736, %v758
    %v761 = vmul.f32 %v738, %v758
    %v762 = vmul.f32 %v741, %v758
    %v763 = vmul.f32 %v743, %v758
    %v764 = vmul.f32 %v746, %v758
    %v765 = vmul.f32 %v748, %v758
    %v766 = vmul.f32 %v751, %v758
    %v767 = vmul.f32 %v753, %v758
    %s768 = scalar_lea.vmem %s4, 1
    %v769 = vld [vmem:[%s768] sm:$0x1]
    %v771 = vperm.slane %v769, 0
    %v773 = vadd.f32 %v760, %v771
    %v774 = vadd.f32 %v761, %v771
    %v775 = vadd.f32 %v762, %v771
    %v776 = vadd.f32 %v763, %v771
    %v777 = vadd.f32 %v764, %v771
    %v778 = vadd.f32 %v765, %v771
    %v779 = vadd.f32 %v766, %v771
    %v780 = vadd.f32 %v767, %v771
    %v781 = vmax.f32 %v773, 0.0
    %v782 = vmax.f32 %v774, 0.0
    %v783 = vmax.f32 %v775, 0.0
    %v784 = vmax.f32 %v776, 0.0
    %v785 = vmax.f32 %v777, 0.0
    %v786 = vmax.f32 %v778, 0.0
    %v787 = vmax.f32 %v779, 0.0
    %v788 = vmax.f32 %v780, 0.0
    %v789 = vpack.c.bf16 %v781, %v781
    %v790 = vpack.c.bf16 %v782, %v782
    %v791 = vpack.c.bf16 %v783, %v783
    %v792 = vpack.c.bf16 %v784, %v784
    %v793 = vpack.c.bf16 %v785, %v785
    %v794 = vpack.c.bf16 %v786, %v786
    %v795 = vpack.c.bf16 %v787, %v787
    %v796 = vpack.c.bf16 %v788, %v788
    %v805 = vunpack.c.l.b16 %v789
    %v806 = vunpack.c.l.b16 %v790
    %v807 = vunpack.c.l.b16 %v791
    %v808 = vunpack.c.l.b16 %v792
    %v809 = vunpack.c.l.b16 %v793
    %v810 = vunpack.c.l.b16 %v794
    %v811 = vunpack.c.l.b16 %v795
    %v812 = vunpack.c.l.b16 %v796
    %v813 = vpack.c.b16 %v806, %v805
    %v814 = vpack.c.b16 %v808, %v807
    %v815 = vpack.c.b16 %v810, %v809
    %v816 = vpack.c.b16 %v812, %v811
    %821 = vmatpush.bf16.msra.mxu0 0
    %822 = vmatpush.bf16.msra.mxu0 0
    %823 = vmatpush.bf16.msra.mxu0 0
    %824 = vmatpush.bf16.msra.mxu0 0
    %825 = vmatpush.bf16.msra.mxu0 %v816
    %826 = vmatpush.bf16.msra.mxu0 %v815
    %827 = vmatpush.bf16.msra.mxu0 %v814
    %828 = vmatpush.bf16.msra.mxu0 %v813
    %829 = vmatmul.bf16.gmra.mxu0 %v105
    %v830 = vpop.f32.mrf.mxu0
    %v831 = vadd.f32 0.0, %v830
    %v832 = vpop.f32.mrf.mxu0
    %v833 = vadd.f32 0.0, %v832
    %834 = vmatmul.bf16.gmra.mxu0 %v108
    %v835 = vpop.f32.mrf.mxu0
    %v836 = vadd.f32 0.0, %v835
    %v837 = vpop.f32.mrf.mxu0
    %v838 = vadd.f32 0.0, %v837
    %839 = vmatmul.bf16.gmra.mxu0 %v111
    %v840 = vpop.f32.mrf.mxu0
    %v841 = vadd.f32 0.0, %v840
    %v842 = vpop.f32.mrf.mxu0
    %v843 = vadd.f32 0.0, %v842
    %844 = vmatmul.bf16.gmra.mxu0 %v114
    %v845 = vpop.f32.mrf.mxu0
    %v846 = vadd.f32 0.0, %v845
    %v847 = vpop.f32.mrf.mxu0
    %v848 = vadd.f32 0.0, %v847
    %849 = vdwg.mxu0
    %v850 = vpack.c.bf16 %v831, %v831
    %v851 = vpack.c.bf16 %v833, %v833
    %v852 = vpack.c.bf16 %v836, %v836
    %v853 = vpack.c.bf16 %v838, %v838
    %v854 = vpack.c.bf16 %v841, %v841
    %v855 = vpack.c.bf16 %v843, %v843
    %v856 = vpack.c.bf16 %v846, %v846
    %v857 = vpack.c.bf16 %v848, %v848
    %858 = vst [vmem:[#allocation2] sm:$0xf] %v850
    %859 = vst [vmem:[#allocation2 + $0x8] sm:$0xf] %v851
    %860 = vst [vmem:[#allocation2 + $0x10] sm:$0xf] %v852
    %861 = vst [vmem:[#allocation2 + $0x18] sm:$0xf] %v853
    %862 = vst [vmem:[#allocation2 + $0x20] sm:$0xf] %v854
    %863 = vst [vmem:[#allocation2 + $0x28] sm:$0xf] %v855
    %864 = vst [vmem:[#allocation2 + $0x30] sm:$0xf] %v856
    %865 = vst [vmem:[#allocation2 + $0x38] sm:$0xf] %v857
    %866 = vst [vmem:[#allocation2 + $0x4] sm:$0xf] %v789
    %867 = vst [vmem:[#allocation2 + $0xc] sm:$0xf] %v790
    %868 = vst [vmem:[#allocation2 + $0x14] sm:$0xf] %v791
    %869 = vst [vmem:[#allocation2 + $0x1c] sm:$0xf] %v792
    %870 = vst [vmem:[#allocation2 + $0x24] sm:$0xf] %v793
    %871 = vst [vmem:[#allocation2 + $0x2c] sm:$0xf] %v794
    %872 = vst [vmem:[#allocation2 + $0x34] sm:$0xf] %v795
    %873 = vst [vmem:[#allocation2 + $0x3c] sm:$0xf] %v796
    %v874 = vld [vmem:[#allocation2] sm:$0xff]
    %v875 = vld [vmem:[#allocation2 + $0x8] sm:$0xff]
    %v876 = vld [vmem:[#allocation2 + $0x10] sm:$0xff]
    %v877 = vld [vmem:[#allocation2 + $0x18] sm:$0xff]
    %v878 = vld [vmem:[#allocation2 + $0x20] sm:$0xff]
    %v879 = vld [vmem:[#allocation2 + $0x28] sm:$0xff]
    %v880 = vld [vmem:[#allocation2 + $0x30] sm:$0xff]
    %v881 = vld [vmem:[#allocation2 + $0x38] sm:$0xff]
    %v882 = vld [vmem:[%s5] sm:$0xf]
    %v883 = vld [vmem:[%s5 + $0x4] sm:$0xf]
    %v884 = vld [vmem:[%s5 + $0x8] sm:$0xf]
    %v885 = vld [vmem:[%s5 + $0xc] sm:$0xf]
    %v886 = vld [vmem:[%s5 + $0x10] sm:$0xf]
    %v887 = vld [vmem:[%s5 + $0x14] sm:$0xf]
    %v888 = vld [vmem:[%s5 + $0x18] sm:$0xf]
    %v889 = vld [vmem:[%s5 + $0x1c] sm:$0xf]
    %v890 = vld [vmem:[%s5 + $0x20] sm:$0xf]
    %v891 = vld [vmem:[%s5 + $0x24] sm:$0xf]
    %v892 = vld [vmem:[%s5 + $0x28] sm:$0xf]
    %v893 = vld [vmem:[%s5 + $0x2c] sm:$0xf]
    %v894 = vld [vmem:[%s5 + $0x30] sm:$0xf]
    %v895 = vld [vmem:[%s5 + $0x34] sm:$0xf]
    %v896 = vld [vmem:[%s5 + $0x38] sm:$0xf]
    %v897 = vld [vmem:[%s5 + $0x3c] sm:$0xf]
    %v898 = vld [vmem:[%s5 + $0x40] sm:$0xf]
    %v899 = vld [vmem:[%s5 + $0x44] sm:$0xf]
    %v900 = vld [vmem:[%s5 + $0x48] sm:$0xf]
    %v901 = vld [vmem:[%s5 + $0x4c] sm:$0xf]
    %v902 = vld [vmem:[%s5 + $0x50] sm:$0xf]
    %v903 = vld [vmem:[%s5 + $0x54] sm:$0xf]
    %v904 = vld [vmem:[%s5 + $0x58] sm:$0xf]
    %v905 = vld [vmem:[%s5 + $0x5c] sm:$0xf]
    %v906 = vld [vmem:[%s5 + $0x60] sm:$0xf]
    %v907 = vld [vmem:[%s5 + $0x64] sm:$0xf]
    %v908 = vld [vmem:[%s5 + $0x68] sm:$0xf]
    %v909 = vld [vmem:[%s5 + $0x6c] sm:$0xf]
    %v910 = vld [vmem:[%s5 + $0x70] sm:$0xf]
    %v911 = vld [vmem:[%s5 + $0x74] sm:$0xf]
    %v912 = vld [vmem:[%s5 + $0x78] sm:$0xf]
    %v913 = vld [vmem:[%s5 + $0x7c] sm:$0xf]
    %v914 = vld [vmem:[%s6] sm:$0x1]
    %v916 = vperm.slane %v914, 0
    %v926 = vunpack.c.l.b16 %v874
    %v927 = vunpack.c.h.b16 %v874
    %v928 = vunpack.c.l.b16 %v875
    %v929 = vunpack.c.h.b16 %v875
    %v930 = vunpack.c.l.b16 %v876
    %v931 = vunpack.c.h.b16 %v876
    %v932 = vunpack.c.l.b16 %v877
    %v933 = vunpack.c.h.b16 %v877
    %v934 = vunpack.c.l.b16 %v878
    %v935 = vunpack.c.h.b16 %v878
    %v936 = vunpack.c.l.b16 %v879
    %v937 = vunpack.c.h.b16 %v879
    %v938 = vunpack.c.l.b16 %v880
    %v939 = vunpack.c.h.b16 %v880
    %v940 = vunpack.c.l.b16 %v881
    %v941 = vunpack.c.h.b16 %v881
    %v942 = vpack.c.b16 %v928, %v926
    %v943 = vpack.c.b16 %v929, %v927
    %v944 = vpack.c.b16 %v932, %v930
    %v945 = vpack.c.b16 %v933, %v931
    %v946 = vpack.c.b16 %v936, %v934
    %v947 = vpack.c.b16 %v937, %v935
    %v948 = vpack.c.b16 %v940, %v938
    %v949 = vpack.c.b16 %v941, %v939
    %v990 = vunpack.c.l.b16 %v882
    %v991 = vunpack.c.l.b16 %v883
    %v992 = vunpack.c.l.b16 %v884
    %v993 = vunpack.c.l.b16 %v885
    %v994 = vunpack.c.l.b16 %v886
    %v995 = vunpack.c.l.b16 %v887
    %v996 = vunpack.c.l.b16 %v888
    %v997 = vunpack.c.l.b16 %v889
    %v998 = vunpack.c.l.b16 %v890
    %v999 = vunpack.c.l.b16 %v891
    %v1000 = vunpack.c.l.b16 %v892
    %v1001 = vunpack.c.l.b16 %v893
    %v1002 = vunpack.c.l.b16 %v894
    %v1003 = vunpack.c.l.b16 %v895
    %v1004 = vunpack.c.l.b16 %v896
    %v1005 = vunpack.c.l.b16 %v897
    %v1006 = vunpack.c.l.b16 %v898
    %v1007 = vunpack.c.l.b16 %v899
    %v1008 = vunpack.c.l.b16 %v900
    %v1009 = vunpack.c.l.b16 %v901
    %v1010 = vunpack.c.l.b16 %v902
    %v1011 = vunpack.c.l.b16 %v903
    %v1012 = vunpack.c.l.b16 %v904
    %v1013 = vunpack.c.l.b16 %v905
    %v1014 = vunpack.c.l.b16 %v906
    %v1015 = vunpack.c.l.b16 %v907
    %v1016 = vunpack.c.l.b16 %v908
    %v1017 = vunpack.c.l.b16 %v909
    %v1018 = vunpack.c.l.b16 %v910
    %v1019 = vunpack.c.l.b16 %v911
    %v1020 = vunpack.c.l.b16 %v912
    %v1021 = vunpack.c.l.b16 %v913
    %v1022 = vpack.c.b16 %v991, %v990
    %v1023 = vpack.c.b16 %v993, %v992
    %v1024 = vpack.c.b16 %v995, %v994
    %v1025 = vpack.c.b16 %v997, %v996
    %v1026 = vpack.c.b16 %v999, %v998
    %v1027 = vpack.c.b16 %v1001, %v1000
    %v1028 = vpack.c.b16 %v1003, %v1002
    %v1029 = vpack.c.b16 %v1005, %v1004
    %v1030 = vpack.c.b16 %v1007, %v1006
    %v1031 = vpack.c.b16 %v1009, %v1008
    %v1032 = vpack.c.b16 %v1011, %v1010
    %v1033 = vpack.c.b16 %v1013, %v1012
    %v1034 = vpack.c.b16 %v1015, %v1014
    %v1035 = vpack.c.b16 %v1017, %v1016
    %v1036 = vpack.c.b16 %v1019, %v1018
    %v1037 = vpack.c.b16 %v1021, %v1020
    %1054 = vmatpush.bf16.msra.mxu0 %v1029
    %1055 = vmatpush.bf16.msra.mxu0 %v1028
    %1056 = vmatpush.bf16.msra.mxu0 %v1027
    %1057 = vmatpush.bf16.msra.mxu0 %v1026
    %1058 = vmatpush.bf16.msra.mxu0 %v1025
    %1059 = vmatpush.bf16.msra.mxu0 %v1024
    %1060 = vmatpush.bf16.msra.mxu0 %v1023
    %1061 = vmatpush.bf16.msra.mxu0 %v1022
    %1062 = vmatmul.bf16.gmra.mxu0 %v942
    %v1063 = vpop.f32.mrf.mxu0
    %v1064 = vadd.f32 %v916, %v1063
    %v1065 = vpop.f32.mrf.mxu0
    %v1066 = vadd.f32 %v916, %v1065
    %1067 = vmatmul.bf16.gmra.mxu0 %v944
    %v1068 = vpop.f32.mrf.mxu0
    %v1069 = vadd.f32 %v916, %v1068
    %v1070 = vpop.f32.mrf.mxu0
    %v1071 = vadd.f32 %v916, %v1070
    %1072 = vmatmul.bf16.gmra.mxu0 %v946
    %v1073 = vpop.f32.mrf.mxu0
    %v1074 = vadd.f32 %v916, %v1073
    %v1075 = vpop.f32.mrf.mxu0
    %v1076 = vadd.f32 %v916, %v1075
    %1077 = vmatmul.bf16.gmra.mxu0 %v948
    %v1078 = vpop.f32.mrf.mxu0
    %v1079 = vadd.f32 %v916, %v1078
    %v1080 = vpop.f32.mrf.mxu0
    %v1081 = vadd.f32 %v916, %v1080
    %1082 = vdwg.mxu0
    %1083 = vmatpush.bf16.msra.mxu0 %v1037
    %1084 = vmatpush.bf16.msra.mxu0 %v1036
    %1085 = vmatpush.bf16.msra.mxu0 %v1035
    %1086 = vmatpush.bf16.msra.mxu0 %v1034
    %1087 = vmatpush.bf16.msra.mxu0 %v1033
    %1088 = vmatpush.bf16.msra.mxu0 %v1032
    %1089 = vmatpush.bf16.msra.mxu0 %v1031
    %1090 = vmatpush.bf16.msra.mxu0 %v1030
    %1091 = vmatmul.bf16.gmra.mxu0 %v943
    %v1092 = vpop.f32.mrf.mxu0
    %v1093 = vadd.f32 %v1064, %v1092
    %v1094 = vpop.f32.mrf.mxu0
    %v1095 = vadd.f32 %v1066, %v1094
    %1096 = vmatmul.bf16.gmra.mxu0 %v945
    %v1097 = vpop.f32.mrf.mxu0
    %v1098 = vadd.f32 %v1069, %v1097
    %v1099 = vpop.f32.mrf.mxu0
    %v1100 = vadd.f32 %v1071, %v1099
    %1101 = vmatmul.bf16.gmra.mxu0 %v947
    %v1102 = vpop.f32.mrf.mxu0
    %v1103 = vadd.f32 %v1074, %v1102
    %v1104 = vpop.f32.mrf.mxu0
    %v1105 = vadd.f32 %v1076, %v1104
    %1106 = vmatmul.bf16.gmra.mxu0 %v949
    %v1107 = vpop.f32.mrf.mxu0
    %v1108 = vadd.f32 %v1079, %v1107
    %v1109 = vpop.f32.mrf.mxu0
    %v1110 = vadd.f32 %v1081, %v1109
    %1111 = vdwg.mxu0
    %1112 = vmax.xlane.f32.xlu0 %v1093
    %v1113 = vpop.xlane.xlu0 %1112
    %1114 = vmax.xlane.f32.xlu0 %v1095
    %v1115 = vpop.xlane.xlu0 %1114
    %1116 = vmax.xlane.f32.xlu0 %v1098
    %v1117 = vpop.xlane.xlu0 %1116
    %1118 = vmax.xlane.f32.xlu0 %v1100
    %v1119 = vpop.xlane.xlu0 %1118
    %1120 = vmax.xlane.f32.xlu0 %v1103
    %v1121 = vpop.xlane.xlu0 %1120
    %1122 = vmax.xlane.f32.xlu0 %v1105
    %v1123 = vpop.xlane.xlu0 %1122
    %1124 = vmax.xlane.f32.xlu0 %v1108
    %v1125 = vpop.xlane.xlu0 %1124
    %1126 = vmax.xlane.f32.xlu0 %v1110
    %v1127 = vpop.xlane.xlu0 %1126
    %v1128 = vsub.f32 %v1093, %v1113
    %v1129 = vsub.f32 %v1095, %v1115
    %v1130 = vsub.f32 %v1098, %v1117
    %v1131 = vsub.f32 %v1100, %v1119
    %v1132 = vsub.f32 %v1103, %v1121
    %v1133 = vsub.f32 %v1105, %v1123
    %v1134 = vsub.f32 %v1108, %v1125
    %v1135 = vsub.f32 %v1110, %v1127
    %v1136 = vmul.f32 %v1128, 1.442695
    %v1137 = vpow.pop %v1136
    %v1138 = vmul.f32 %v1129, 1.442695
    %v1139 = vpow.pop %v1138
    %v1140 = vmul.f32 %v1130, 1.442695
    %v1141 = vpow.pop %v1140
    %v1142 = vmul.f32 %v1131, 1.442695
    %v1143 = vpow.pop %v1142
    %v1144 = vmul.f32 %v1132, 1.442695
    %v1145 = vpow.pop %v1144
    %v1146 = vmul.f32 %v1133, 1.442695
    %v1147 = vpow.pop %v1146
    %v1148 = vmul.f32 %v1134, 1.442695
    %v1149 = vpow.pop %v1148
    %v1150 = vmul.f32 %v1135, 1.442695
    %v1151 = vpow.pop %v1150
    %1152 = vadd.xlane.f32.xlu0 %v1137
    %v1153 = vpop.xlane.xlu0 %1152
    %1154 = vadd.xlane.f32.xlu0 %v1139
    %v1155 = vpop.xlane.xlu0 %1154
    %1156 = vadd.xlane.f32.xlu0 %v1141
    %v1157 = vpop.xlane.xlu0 %1156
    %1158 = vadd.xlane.f32.xlu0 %v1143
    %v1159 = vpop.xlane.xlu0 %1158
    %1160 = vadd.xlane.f32.xlu0 %v1145
    %v1161 = vpop.xlane.xlu0 %1160
    %1162 = vadd.xlane.f32.xlu0 %v1147
    %v1163 = vpop.xlane.xlu0 %1162
    %1164 = vadd.xlane.f32.xlu0 %v1149
    %v1165 = vpop.xlane.xlu0 %1164
    %1166 = vadd.xlane.f32.xlu0 %v1151
    %v1167 = vpop.xlane.xlu0 %1166
    %v1168 = vlog2.pop %v1153
    %v1169 = vmul.f32 %v1168, 0.6931472
    %v1170 = vlog2.pop %v1155
    %v1171 = vmul.f32 %v1170, 0.6931472
    %v1172 = vlog2.pop %v1157
    %v1173 = vmul.f32 %v1172, 0.6931472
    %v1174 = vlog2.pop %v1159
    %v1175 = vmul.f32 %v1174, 0.6931472
    %v1176 = vlog2.pop %v1161
    %v1177 = vmul.f32 %v1176, 0.6931472
    %v1178 = vlog2.pop %v1163
    %v1179 = vmul.f32 %v1178, 0.6931472
    %v1180 = vlog2.pop %v1165
    %v1181 = vmul.f32 %v1180, 0.6931472
    %v1182 = vlog2.pop %v1167
    %v1183 = vmul.f32 %v1182, 0.6931472
    %v1184 = vsub.f32 %v1128, %v1169
    %v1185 = vsub.f32 %v1129, %v1171
    %v1186 = vsub.f32 %v1130, %v1173
    %v1187 = vsub.f32 %v1131, %v1175
    %v1188 = vsub.f32 %v1132, %v1177
    %v1189 = vsub.f32 %v1133, %v1179
    %v1190 = vsub.f32 %v1134, %v1181
    %v1191 = vsub.f32 %v1135, %v1183
    %1192 = vst [vmem:[%s7] sm:$0xff] %v1184
    %1193 = vst [vmem:[%s7 + $0x8] sm:$0xff] %v1185
    %1194 = vst [vmem:[%s7 + $0x10] sm:$0xff] %v1186
    %1195 = vst [vmem:[%s7 + $0x18] sm:$0xff] %v1187
    %1196 = vst [vmem:[%s7 + $0x20] sm:$0xff] %v1188
    %1197 = vst [vmem:[%s7 + $0x28] sm:$0xff] %v1189
    %1198 = vst [vmem:[%s7 + $0x30] sm:$0xff] %v1190
    %1199 = vst [vmem:[%s7 + $0x38] sm:$0xff] %v1191
    // Predicated region
    $region34: #{sage_forward.1} parent=1 // pred_check
      _
    $region35: #{sage_forward.1} parent=1 // pred_check_branch
      %1201 = sbr.rel (0) target = $region37
    $region36: #{sage_forward.1} parent=1 // pred_region
      _
    $region37: #{sage_forward.1} parent=1 // pred_fallthru
      _
    // Predicated region
    $region38: #{sage_forward.1} parent=1 // pred_check
      _
    $region39: #{sage_forward.1} parent=1 // pred_check_branch
      %1203 = sbr.rel (0) target = $region41
    $region40: #{sage_forward.1} parent=1 // pred_region
      _
    $region41: #{sage_forward.1} parent=1 // pred_fallthru
      _
    %1204 = vsyncpa [#allocation4], 1

</llo_original>
